<compile_context>
chip_gen: v6e
topology: v6e:2x2x1
jax: 0.10.0
libtpu: 0.0.40
codegen_flags: <defaults>
</compile_context>

<pallas_src>
import jax
import jax.numpy as jnp
from jax.experimental import pallas as pl
from jax.experimental.pallas import tpu as pltpu

LANE = 128
SUBLANE = 8
MAX_TILE_M = 1024


def _round_up(x, m):
    return ((x + m - 1) // m) * m


def _choose_tile_m(M):
    """Largest tile <= MAX_TILE_M that still yields an even (>=2) grid.

    An even number of grid steps lets v7x's two TensorCores share the
    "parallel" M axis; on v5e/v6e (single TC) the extra step is ~free since
    the kernel is HBM-bound and the DMA pipeline hides it.
    """
    if M <= SUBLANE:
        return SUBLANE
    chunks = max(2, pl.cdiv(M, MAX_TILE_M))
    if chunks % 2:
        chunks += 1
    tile_m = _round_up(pl.cdiv(M, chunks), SUBLANE)
    return min(tile_m, MAX_TILE_M)


def decoder_kernel(x_ref, w_ref, b_ref, o_ref):
    # X: (tile_m, H), W: (H, E_out), b: (1, E_out)  ->  O: (tile_m, E_out)
    y = jnp.dot(x_ref[...], w_ref[...], preferred_element_type=jnp.float32)
    y = y + b_ref[...]                              # f32 bias add
    o_ref[...] = jnp.tanh(y).astype(o_ref.dtype)    # f32 tanh, cast at store


@jax.jit
def decoder_forward(hidden, weight_t, bias):
    """hidden: (..., H), weight_t: (H, E), bias: (E,) -> (..., E)

    Computes tanh(hidden @ weight_t + bias).  Dropout(p=0) and GradReverse
    are identities in the forward pass, so they are omitted.
    """
    *lead, H = hidden.shape
    E = weight_t.shape[1]
    x2d = hidden.reshape(-1, H)
    M = x2d.shape[0]
    itemsize = jnp.dtype(hidden.dtype).itemsize

    # Lane padding only when E is large enough that the pad fraction is small;
    # for small E the full-extent last dim is legal and avoids 8x write
    # amplification (masked stores are hidden under the DMA on a mem-bound
    # kernel).
    if E >= LANE and E % LANE != 0:
        E_out = _round_up(E, LANE)
        w_in = jnp.pad(weight_t, ((0, 0), (0, E_out - E)))
        b_in = jnp.pad(bias, (0, E_out - E)).reshape(1, E_out)
    else:
        E_out = E
        w_in = weight_t
        b_in = bias.reshape(1, E)

    tile_m = _choose_tile_m(M)
    grid_m = pl.cdiv(M, tile_m)   # partial last block is masked on store

    out2d = pl.pallas_call(
        decoder_kernel,
        out_shape=jax.ShapeDtypeStruct((M, E_out), hidden.dtype),
        grid_spec=pltpu.PrefetchScalarGridSpec(
            num_scalar_prefetch=0,
            grid=(grid_m,),
            in_specs=[
                # X tiles march down M; W and bias stay resident in VMEM
                # (constant block index -> fetched once).
                pl.BlockSpec((tile_m, H), lambda i: (i, 0)),
                pl.BlockSpec((H, E_out), lambda i: (0, 0)),
                pl.BlockSpec((1, E_out), lambda i: (0, 0)),
            ],
            out_specs=pl.BlockSpec((tile_m, E_out), lambda i: (i, 0)),
        ),
        compiler_params=pltpu.CompilerParams(
            # Rows are independent -> shardable across v7x's 2 TensorCores.
            dimension_semantics=("parallel",),
        ),
        cost_estimate=pl.CostEstimate(
            flops=2 * M * H * E,
            transcendentals=M * E,
            bytes_accessed=itemsize * (M * H + M * E)
            + jnp.dtype(weight_t.dtype).itemsize * H * E
            + jnp.dtype(bias.dtype).itemsize * E,
        ),
    )(x2d, w_in, b_in)

    if E_out != E:
        out2d = out2d[:, :E]
    return out2d.reshape(*lead, E)


def init_decoder_params(key, hidden_size, emb_size, dtype=jnp.float32):
    """Deterministic init mirroring nn.Linear default (uniform +/- 1/sqrt(H))."""
    k_w, k_b = jax.random.split(key)
    bound = 1.0 / (hidden_size ** 0.5)
    # PyTorch weight is (emb_size, hidden_size); we store the transpose (H, E).
    weight_t = jax.random.uniform(
        k_w, (hidden_size, emb_size), dtype=dtype, minval=-bound, maxval=bound
    )
    bias = jax.random.uniform(
        k_b, (emb_size,), dtype=dtype, minval=-bound, maxval=bound
    )
    return weight_t, bias


if __name__ == "__main__":
    key = jax.random.PRNGKey(0)
    k_in, k_params = jax.random.split(key)

    batch, seq, hidden_size, emb_size = 2, 8, 32, 16

    hidden = jax.random.normal(k_in, (batch, seq, hidden_size), dtype=jnp.float32)
    weight_t, bias = init_decoder_params(k_params, hidden_size, emb_size)

    # dropout_rate=0.0 -> identity; GradReverse is identity in the forward pass.
    out = decoder_forward(hidden, weight_t, bias)
    out = jax.block_until_ready(out)

    # Sanity check against plain-JAX reference.
    ref = jnp.tanh(hidden @ weight_t + bias)
    assert out.shape == (batch, seq, emb_size)
    assert jnp.allclose(out, ref, atol=1e-5, rtol=1e-5)

    print("KERNEL_OK")
</pallas_src>

<mosaic_0001>
module attributes {stable_mosaic.version = 11 : i64} {
  func.func @decoder_kernel(%arg0: i32, %arg1: memref<8x32xf32, #tpu.memory_space<vmem>>, %arg2: memref<32x16xf32, #tpu.memory_space<vmem>>, %arg3: memref<1x16xf32, #tpu.memory_space<vmem>>, %arg4: memref<8x16xf32, #tpu.memory_space<vmem>>) attributes {dimension_semantics = [#tpu.dimension_semantics<parallel>], iteration_bounds = array<i64: 2>, scalar_prefetch = 0 : i64, scratch_operands = 0 : i64, tpu.core_type = #tpu.core_type<tc>, window_params = [{transform_indices = @transform_0, window_bounds = array<i64: 8, 32>}, {pipeline_mode = #tpu.pipeline_mode<synchronous>, transform_indices = @transform_1, window_bounds = array<i64: 32, 16>}, {pipeline_mode = #tpu.pipeline_mode<synchronous>, transform_indices = @transform_2, window_bounds = array<i64: 1, 16>}, {transform_indices = @transform_3, window_bounds = array<i64: 8, 16>}]} {
    %c0 = arith.constant 0 : index
    %c0_0 = arith.constant 0 : index
    %0 = vector.load %arg1[%c0, %c0_0] : memref<8x32xf32, #tpu.memory_space<vmem>>, vector<8x32xf32>
    %c0_1 = arith.constant 0 : index
    %c0_2 = arith.constant 0 : index
    %1 = vector.load %arg2[%c0_1, %c0_2] : memref<32x16xf32, #tpu.memory_space<vmem>>, vector<32x16xf32>
    %cst = arith.constant dense<0.000000e+00> : vector<8x16xf32>
    %2 = tpu.matmul %0, %1, %cst {dimension_numbers = #tpu.dot_dimension_numbers<[1], [0], [0], [1], [0, 0, 1, 1], [], []>} : vector<8x32xf32>, vector<32x16xf32>, vector<8x16xf32> -> vector<8x16xf32>
    %c0_3 = arith.constant 0 : index
    %c0_4 = arith.constant 0 : index
    %3 = vector.load %arg3[%c0_3, %c0_4] : memref<1x16xf32, #tpu.memory_space<vmem>>, vector<1x16xf32>
    %4 = vector.broadcast %3 : vector<1x16xf32> to vector<8x16xf32>
    %5 = arith.addf %2, %4 : vector<8x16xf32>
    %6 = math.tanh %5 : vector<8x16xf32>
    %c0_5 = arith.constant 0 : index
    %c0_6 = arith.constant 0 : index
    %7 = vector.load %arg4[%c0_5, %c0_6] : memref<8x16xf32, #tpu.memory_space<vmem>>, vector<8x16xf32>
    tpu.vector_store %arg4[%c0_5, %c0_6], %6 {strides = array<i32>} : memref<8x16xf32, #tpu.memory_space<vmem>>, vector<8x16xf32>,
    return
  }
  func.func @transform_0(%arg0: i32) -> (i32, i32) {
    %c0_i32 = arith.constant 0 : i32
    %c0_i32_0 = arith.constant 0 : i32
    return %arg0, %c0_i32 : i32, i32
  }
  func.func @transform_1(%arg0: i32) -> (i32, i32) {
    %c0_i32 = arith.constant 0 : i32
    %c0_i32_0 = arith.constant 0 : i32
    %c0_i32_1 = arith.constant 0 : i32
    return %c0_i32, %c0_i32_0 : i32, i32
  }
  func.func @transform_2(%arg0: i32) -> (i32, i32) {
    %c0_i32 = arith.constant 0 : i32
    %c0_i32_0 = arith.constant 0 : i32
    %c0_i32_1 = arith.constant 0 : i32
    return %c0_i32, %c0_i32_0 : i32, i32
  }
  func.func @transform_3(%arg0: i32) -> (i32, i32) {
    %c0_i32 = arith.constant 0 : i32
    %c0_i32_0 = arith.constant 0 : i32
    return %arg0, %c0_i32 : i32, i32
  }
}

</mosaic_0001>

<llo_original>
// kernel: decoder_forward.1
$region0: #{decoder_forward.1}
  #allocation0 [shape = 'u32[]', space=smem, size = 0x4, offset = 0x4, fixed_abs, tag = 'smem constant byte address 0x4 - core index']
  #allocation1 [shape = 'u32[144,128]{1,0:T(1,128)}', space=vmem, size = 0x12000, scoped, tag = 'internal scratch']
  %s0 = inlined_call_operand.vmem [shape: f32[16,32], index: 0, kind: input, shape index: {}]
  %s1 = inlined_call_operand.vmem [shape: f32[32,16], index: 1, kind: input, shape index: {}]
  %s2 = inlined_call_operand.vmem [shape: f32[1,16], index: 2, kind: input, shape index: {}]
  %s3 = inlined_call_operand.hbm [shape: f32[16,16], index: 3, kind: output, shape index: {}]
  %s4 = sld [smem:[#allocation0]]
  $region45: #{decoder_forward.1} parent=0
    _
  %s6 = ssub.s32 1, %s4
  %s7 = scalar_select 0, %s6, %s4
  $region1: #{decoder_forward.1} parent=0
    #allocation2 [shape = 'u8[8192]{0}', space=vmem, size = 0x2000, scoped, tag = 'output window, operand 0']
    #allocation3 [shape = 's32[2]{0}', space=sflag, size = 0x8, scoped, tag = 'scoped memory for decoder_forward.1']
    %8 = vsyncpa [#allocation3], 0
    %s9 = scalar_lea.sflag [#allocation3], 1
    %10 = vsyncpa %s9, 0
    loop: start=0, step=1, limit=4
    $region2: #{decoder_forward.1} parent=1 // loop_pre_header
      _
    $region3: #{decoder_forward.1} parent=1 // loop_header
      %s12 = sphi 0, %s16
      %p13 = scmp.ge.s32.totalorder %s12, 4
      %s22 = sphi 0, %s24
      %s25 = sphi 0, %s22
      %s26 = sphi 0, %s25
      %s42 = sphi 0, %s26
      %s46 = sphi 0, %s46
      %s48 = sphi 0, %s46
      %s49 = sphi 0, %s48
      %s63 = sphi 0, %s49
      %s67 = sphi 0, %s67
      %s69 = sphi 0, %s67
      %s70 = sphi 0, %s69
      %s84 = sphi 0, %s70
      %s90 = sphi 0, %s92
      %s93 = sphi 0, %s90
      %s94 = sphi 0, %s93
      %s110 = sphi 0, %s94
    $region4: #{decoder_forward.1} parent=1 // loop_header_branch
      %15 = sbr.rel (%p13) target = $region8
    $region5: #{decoder_forward.1} parent=1 // loop_body
      %s17 = ssub.s32 %s12, 1
      %s18 = ssub.s32 %s12, 2
      %s19 = sadd.s32 %s12, 1
      %s20 = ssub.s32 %s12, %s19
      %p21 = scmp.eq.s32.totalorder %s20, 0
      %s23 = sadd.s32 %s22, 1
      %s24 = scalar_select %p21, %s22, %s23
      %p27 = pneg %p21
      %p28 = scmp.eq.s32.totalorder %s12, 1
      %p29 = por %p27, %p28
      %p30 = scmp.ne.s32.totalorder %s22, %s25
      %p31 = scmp.eq.s32.totalorder %s12, 0
      %p32 = por %p30, %p31
      %p33 = scmp.ne.s32.totalorder %s22, %s25
      %p34 = scmp.eq.s32.totalorder %s17, 1
      %p35 = por %p33, %p34
      %p36 = scmp.ne.s32.totalorder %s25, %s26
      %p37 = scmp.eq.s32.totalorder %s17, 0
      %p38 = por %p36, %p37
      %p39 = scmp.ne.s32.totalorder %s25, %s26
      %p40 = scmp.eq.s32.totalorder %s18, 1
      %p41 = por %p39, %p40
      %p43 = scmp.ne.s32.totalorder %s26, %s42
      %p44 = scmp.eq.s32.totalorder %s18, 0
      %p45 = por %p43, %p44
      %s47 = sadd.s32 %s46, 1
      %p50 = scmp.eq.s32.totalorder %s12, 1
      %p51 = scmp.ne.s32.totalorder %s46, %s48
      %p52 = scmp.eq.s32.totalorder %s12, 0
      %p53 = por %p51, %p52
      %p54 = scmp.ne.s32.totalorder %s46, %s48
      %p55 = scmp.eq.s32.totalorder %s17, 1
      %p56 = por %p54, %p55
      %p57 = scmp.ne.s32.totalorder %s48, %s49
      %p58 = scmp.eq.s32.totalorder %s17, 0
      %p59 = por %p57, %p58
      %p60 = scmp.ne.s32.totalorder %s48, %s49
      %p61 = scmp.eq.s32.totalorder %s18, 1
      %p62 = por %p60, %p61
      %p64 = scmp.ne.s32.totalorder %s49, %s63
      %p65 = scmp.eq.s32.totalorder %s18, 0
      %p66 = por %p64, %p65
      %s68 = sadd.s32 %s67, 1
      %p71 = scmp.eq.s32.totalorder %s12, 1
      %p72 = scmp.ne.s32.totalorder %s67, %s69
      %p73 = scmp.eq.s32.totalorder %s12, 0
      %p74 = por %p72, %p73
      %p75 = scmp.ne.s32.totalorder %s67, %s69
      %p76 = scmp.eq.s32.totalorder %s17, 1
      %p77 = por %p75, %p76
      %p78 = scmp.ne.s32.totalorder %s69, %s70
      %p79 = scmp.eq.s32.totalorder %s17, 0
      %p80 = por %p78, %p79
      %p81 = scmp.ne.s32.totalorder %s69, %s70
      %p82 = scmp.eq.s32.totalorder %s18, 1
      %p83 = por %p81, %p82
      %p85 = scmp.ne.s32.totalorder %s70, %s84
      %p86 = scmp.eq.s32.totalorder %s18, 0
      %p87 = por %p85, %p86
      %s88 = ssub.s32 %s12, %s19
      %p89 = scmp.eq.s32.totalorder %s88, 0
      %s91 = sadd.s32 %s90, 1
      %s92 = scalar_select %p89, %s90, %s91
      %p95 = pneg %p89
      %p96 = scmp.eq.s32.totalorder %s12, 1
      %p97 = por %p95, %p96
      %p98 = scmp.ne.s32.totalorder %s90, %s93
      %p99 = scmp.eq.s32.totalorder %s12, 0
      %p100 = por %p98, %p99
      %p101 = scmp.ne.s32.totalorder %s90, %s93
      %p102 = scmp.eq.s32.totalorder %s17, 1
      %p103 = por %p101, %p102
      %p104 = scmp.ne.s32.totalorder %s93, %s94
      %p105 = scmp.eq.s32.totalorder %s17, 0
      %p106 = por %p104, %p105
      %p107 = scmp.ne.s32.totalorder %s93, %s94
      %p108 = scmp.eq.s32.totalorder %s18, 1
      %p109 = por %p107, %p108
      %p111 = scmp.ne.s32.totalorder %s94, %s110
      %p112 = scmp.eq.s32.totalorder %s18, 0
      %p113 = por %p111, %p112
      %p114 = scmp.le.s32.totalorder 1, %s12
      %p115 = scmp.lt.s32.totalorder %s12, 3
      %p116 = pnand %p114, %p115
      %p117 = pneg %p116
      // Predicated region
      $region9: #{decoder_forward.1} parent=5 // pred_check
        _
      $region10: #{decoder_forward.1} parent=5 // pred_check_branch
        %119 = sbr.rel (%p116) target = $region12
      $region11: #{decoder_forward.1} parent=5 // pred_region
        %s120 = ssub.s32 %s12, 1
        // Predicated region
        $region13: #{decoder_forward.1} parent=11 // pred_check
          %p121 = pneg %p59
        $region14: #{decoder_forward.1} parent=11 // pred_check_branch
          %123 = sbr.rel (%p121) target = $region16
        $region15: #{decoder_forward.1} parent=11 // pred_region
          _
        $region16: #{decoder_forward.1} parent=11 // pred_fallthru
          _
        // Predicated region
        $region17: #{decoder_forward.1} parent=11 // pred_check
          %p124 = pneg %p80
        $region18: #{decoder_forward.1} parent=11 // pred_check_branch
          %126 = sbr.rel (%p124) target = $region20
        $region19: #{decoder_forward.1} parent=11 // pred_region
          _
        $region20: #{decoder_forward.1} parent=11 // pred_fallthru
          _
      $region12: #{decoder_forward.1} parent=5 // pred_fallthru
        _
      %p127 = scmp.lt.s32.totalorder %s12, 2
      // Predicated region
      $region21: #{decoder_forward.1} parent=5 // pred_check
        %p128 = pneg %p127
      $region22: #{decoder_forward.1} parent=5 // pred_check_branch
        %130 = sbr.rel (%p128) target = $region24
      $region23: #{decoder_forward.1} parent=5 // pred_region
        // Predicated region
        $region25: #{decoder_forward.1} parent=23 // pred_check
          %p131 = pneg %p32
        $region26: #{decoder_forward.1} parent=23 // pred_check_branch
          %133 = sbr.rel (%p131) target = $region28
        $region27: #{decoder_forward.1} parent=23 // pred_region
          %p134 = scmp.lt.s32.totalorder %s12, 1
          %s135 = scalar_select %p134, %s12, 1
          %s136 = smul.addr %s135, 8
          %s137 = scalar_lea.vmem %s0, %s136
        $region28: #{decoder_forward.1} parent=23 // pred_fallthru
          _
      $region24: #{decoder_forward.1} parent=5 // pred_fallthru
        _
      %p138 = scmp.le.s32.totalorder 1, %s12
      %p139 = scmp.lt.s32.totalorder %s12, 3
      %p140 = pnand %p138, %p139
      %p141 = pneg %p140
      // Predicated region
      $region29: #{decoder_forward.1} parent=5 // pred_check
        _
      $region30: #{decoder_forward.1} parent=5 // pred_check_branch
        %143 = sbr.rel (%p140) target = $region32
      $region31: #{decoder_forward.1} parent=5 // pred_region
        %s144 = ssub.s32 %s12, 1
        %p145 = scmp.lt.s32.totalorder %s17, 1
        %s146 = scalar_select %p145, %s17, 1
        %s147 = smul.addr %s146, 8
        %s148 = scalar_lea.vmem %s0, %s147
        %p149 = pneg %p38
        %p150 = pneg %p35
        %p151 = pneg %p59
        %p152 = pneg %p56
        %p153 = pneg %p80
        %p154 = pneg %p77
        %p155 = pneg %p106
        %p156 = pneg %p103
        %s157 = sand.u32 %s93, 1
        %s158 = scalar_lea.sflag [#allocation3], %s157
        %s159 = sand.u32 %s93, 1
        %s160 = smul.addr %s159, 8
        %s161 = scalar_lea.vmem [#allocation2], %s160
        %p162 = scmp.lt.s32.totalorder %s17, 1
        %s163 = scalar_select %p162, %s17, 1
        %s164 = smul.addr %s163, 8
        %s165 = scalar_lea.vmem %s0, %s164
        %v166 = vld [vmem:[%s165] sm:$0xff]
        %v167 = vld [vmem:[%s1] sm:$0xff]
        %v168 = vld [vmem:[%s1 + $0x8] sm:$0xff]
        %v169 = vld [vmem:[%s1 + $0x10] sm:$0xff]
        %v170 = vld [vmem:[%s1 + $0x18] sm:$0xff]
        %v171 = vld [vmem:[%s2] sm:$0x1]
        %v173 = vlaneseq
        %v174 = vshrl.u32 %v173, 7
        %v175 = vsub.s32 0, %v174
        %v176 = vrot.slane %v171, %v175
        %vm178 = vcmask 261120
        %v180 = vsel %vm178, %v166, 0
        %182 = vmatprep.subr.mxu0 0.0
        %183 = vmatpush1.msra.mxu0 0.0
        %184 = vmatprep.subr.mxu0 0.0
        %185 = vmatpush1.msra.mxu0 0.0
        %186 = vmatprep.subr.mxu0 0.0
        %187 = vmatpush1.msra.mxu0 0.0
        %188 = vmatprep.subr.mxu0 0.0
        %189 = vmatpush1.msra.mxu0 0.0
        %190 = vmatprep.subr.mxu0 0.0
        %191 = vmatpush1.msra.mxu0 0.0
        %192 = vmatprep.subr.mxu0 0.0
        %193 = vmatpush1.msra.mxu0 0.0
        %194 = vmatprep.subr.mxu0 0.0
        %195 = vmatpush1.msra.mxu0 0.0
        %196 = vmatprep.subr.mxu0 0.0
        %197 = vmatpush1.msra.mxu0 0.0
        %198 = vmatprep.subr.mxu0 0.0
        %199 = vmatpush1.msra.mxu0 0.0
        %200 = vmatprep.subr.mxu0 0.0
        %201 = vmatpush1.msra.mxu0 0.0
        %202 = vmatprep.subr.mxu0 0.0
        %203 = vmatpush1.msra.mxu0 0.0
        %204 = vmatprep.subr.mxu0 0.0
        %205 = vmatpush1.msra.mxu0 0.0
        %206 = vmatprep.subr.mxu0 0.0
        %207 = vmatpush1.msra.mxu0 %v170
        %208 = vmatprep.subr.mxu0 0.0
        %209 = vmatpush1.msra.mxu0 %v169
        %210 = vmatprep.subr.mxu0 0.0
        %211 = vmatpush1.msra.mxu0 %v168
        %212 = vmatprep.subr.mxu0 0.0
        %213 = vmatpush1.msra.mxu0 %v167
        %214 = vmatprep.subr.mxu0 0.0
        %215 = vmatpush2.msra.mxu0 0.0
        %216 = vmatprep.subr.mxu0 0.0
        %217 = vmatpush2.msra.mxu0 0.0
        %218 = vmatprep.subr.mxu0 0.0
        %219 = vmatpush2.msra.mxu0 0.0
        %220 = vmatprep.subr.mxu0 0.0
        %221 = vmatpush2.msra.mxu0 0.0
        %222 = vmatprep.subr.mxu0 0.0
        %223 = vmatpush2.msra.mxu0 0.0
        %224 = vmatprep.subr.mxu0 0.0
        %225 = vmatpush2.msra.mxu0 0.0
        %226 = vmatprep.subr.mxu0 0.0
        %227 = vmatpush2.msra.mxu0 0.0
        %228 = vmatprep.subr.mxu0 0.0
        %229 = vmatpush2.msra.mxu0 0.0
        %230 = vmatprep.subr.mxu0 0.0
        %231 = vmatpush2.msra.mxu0 0.0
        %232 = vmatprep.subr.mxu0 0.0
        %233 = vmatpush2.msra.mxu0 0.0
        %234 = vmatprep.subr.mxu0 0.0
        %235 = vmatpush2.msra.mxu0 0.0
        %236 = vmatprep.subr.mxu0 0.0
        %237 = vmatpush2.msra.mxu0 0.0
        %238 = vmatprep.subr.mxu0 0.0
        %239 = vmatpush2.msra.mxu0 0.0
        %240 = vmatprep.subr.mxu0 0.0
        %241 = vmatpush2.msra.mxu0 0.0
        %242 = vmatprep.subr.mxu0 0.0
        %243 = vmatpush2.msra.mxu0 0.0
        %244 = vmatprep.subr.mxu0 0.0
        %245 = vmatpush2.msra.mxu0 0.0
        %246 = vmatprep.mubr.f32.mxu0 0.0
        %247 = vmatmul.mubr.f32.gmra.mxu0 %v180
        %v248 = vpop.f32.mrf.mxu0
        %v249 = vadd.f32 %v176, %v248
        %v250 = vpop.f32.mrf.mxu0
        %251 = vdwg.mxu0
        %v252 = vtanh.pop %v249
        %vm253 = vcmask 130048
        %254 = vst.msk [vmem:[%s161] sm:$0xff] %vm253, %v252
        %s255 = sand.u32 %s93, 1
        %s256 = scalar_lea.sflag [#allocation3], %s255
        %s257 = sand.u32 %s93, 1
        %s258 = smul.addr %s257, 8
        %s259 = scalar_lea.vmem [#allocation2], %s258
        // Predicated region
        $region33: #{decoder_forward.1} parent=31 // pred_check
          %p260 = pneg %p103
        $region34: #{decoder_forward.1} parent=31 // pred_check_branch
          %262 = sbr.rel (%p260) target = $region36
        $region35: #{decoder_forward.1} parent=31 // pred_region
          %s264 = ssub.s32 128, 128
          %265 = vsyncadd %s256, %s264
          %s266 = smul.addr %s17, 128
          %s267 = scalar_lea.hbm %s3, %s266
          %s269 = sshll.u32 %s259, 4
          %s270 = int_to_ptr.vmem [resolvable:$true] %s269
          %272 = dma.vmem_to_hbm [thread:$0]  %s270, 128, %s267, %s256
        $region36: #{decoder_forward.1} parent=31 // pred_fallthru
          _
      $region32: #{decoder_forward.1} parent=5 // pred_fallthru
        _
      %p273 = scmp.le.s32.totalorder 2, %s12
      // Predicated region
      $region37: #{decoder_forward.1} parent=5 // pred_check
        %p274 = pneg %p273
      $region38: #{decoder_forward.1} parent=5 // pred_check_branch
        %276 = sbr.rel (%p274) target = $region40
      $region39: #{decoder_forward.1} parent=5 // pred_region
        %s277 = ssub.s32 %s12, 2
        // Predicated region
        $region41: #{decoder_forward.1} parent=39 // pred_check
          %p278 = pneg %p109
        $region42: #{decoder_forward.1} parent=39 // pred_check_branch
          %280 = sbr.rel (%p278) target = $region44
        $region43: #{decoder_forward.1} parent=39 // pred_region
          %s281 = sand.u32 %s94, 1
          %s282 = scalar_lea.sflag [#allocation3], %s281
          %s283 = sand.u32 %s94, 1
          %s284 = smul.addr %s283, 8
          %s285 = scalar_lea.vmem [#allocation2], %s284
          %286 = dma.done %s282, 128
        $region44: #{decoder_forward.1} parent=39 // pred_fallthru
          _
      $region40: #{decoder_forward.1} parent=5 // pred_fallthru
        _
    $region6: #{decoder_forward.1} parent=1 // loop_footer
      %s16 = sadd.s32 1, %s12
    $region7: #{decoder_forward.1} parent=1 // loop_footer_branch
      %11 = sbr.rel target = $region3
    $region8: #{decoder_forward.1} parent=1 // loop_exit
      _
    %287 = vsyncpa [#allocation3], 1
    %s288 = scalar_lea.sflag [#allocation3], 1
    %289 = vsyncpa %s288, 1

</llo_original>
